<compile_context>
chip_gen: v7x
topology: tpu7x:2x2x1
jax: 0.10.0
libtpu: 0.0.40
codegen_flags: <defaults>
</compile_context>

<pallas_src>
import functools

import jax
import jax.numpy as jnp
from jax import lax
from jax.experimental import pallas as pl
from jax.experimental.pallas import tpu as pltpu

LEAKY_SLOPE = 0.01  # nn.LeakyReLU default negative_slope


def _leaky_relu(x):
    return jnp.where(x > 0, x, LEAKY_SLOPE * x)


def _softplus(x):
    # Matches torch.nn.Softplus(beta=1, threshold=20)
    return jnp.where(x > 20.0, x, jnp.log1p(jnp.exp(jnp.minimum(x, 20.0))))


def generator_kernel(z_ref,
                     w1_ref, b1_ref,
                     w2_ref, b2_ref,
                     wh_ref, bh_ref,
                     out_ref,
                     *, x_dim, eps):
    # z stays f32 / unpadded in HBM; the bf16 cast rides the VPU for free.
    z = z_ref[...].astype(jnp.bfloat16)

    # layer1: (folded) Linear+BN -> LeakyReLU, downcast fused with activation.
    h1 = jnp.dot(z, w1_ref[...], preferred_element_type=jnp.float32) + b1_ref[...]
    h1 = _leaky_relu(h1).astype(jnp.bfloat16)

    # layer2
    h2 = jnp.dot(h1, w2_ref[...], preferred_element_type=jnp.float32) + b2_ref[...]
    h2 = _leaky_relu(h2).astype(jnp.bfloat16)

    # fused heads: columns [0, x_dim) = mean, [x_dim, 2*x_dim) = std.
    y = jnp.dot(h2, wh_ref[...], preferred_element_type=jnp.float32) + bh_ref[...]
    cols = lax.broadcasted_iota(jnp.int32, y.shape, 1)
    y = jnp.where(cols >= x_dim, _softplus(y) + eps, y)

    out_ref[...] = y


def prepare_params(params):
    """One-time host-side prep: fold BN + bias, fuse heads, cast weights to bf16."""
    w1f = (params["w1"] * params["s1"]).astype(jnp.bfloat16)        # (z_dim, H1)
    b1f = params["b1"] * params["s1"] + params["t1"]                # (1, H1) f32
    w2f = (params["w2"] * params["s2"]).astype(jnp.bfloat16)        # (H1, H2)
    b2f = params["b2"] * params["s2"] + params["t2"]                # (1, H2) f32
    wh = jnp.concatenate([params["wm"], params["ws"]], axis=1).astype(jnp.bfloat16)
    bh = jnp.concatenate([params["bm"], params["bs"]], axis=1)      # (1, 2*x_dim) f32
    return dict(w1=w1f, b1=b1f, w2=w2f, b2=b2f, wh=wh, bh=bh,
                x_dim=int(params["wm"].shape[1]))


def _pick_batch_tile(B, batch_tile):
    # Round the requested tile to a multiple of 256 (MXU M), never below 16
    # (bf16 sublane tile is (16, 128)).
    bt = max(16, min(int(batch_tile), pl.cdiv(B, 16) * 16))
    if bt >= 256:
        bt = (bt // 256) * 256
    else:
        bt = pl.cdiv(bt, 16) * 16
    # v7x megacore: keep >= 2 grid steps once the batch is big enough so the
    # "parallel" axis can shard across both TensorCores.
    if B >= 512 and pl.cdiv(B, bt) < 2:
        bt = max(256, (pl.cdiv(B, 2) // 256) * 256)
    return bt


def generator_forward(z, prep, *, eps=1e-4, batch_tile=1024):
    """z: (B, z_dim) f32.  prep: output of prepare_params.
    Returns (x_mean, x_std), each (B, x_dim) f32."""
    B, z_dim = z.shape
    x_dim = prep["x_dim"]
    n_out = 2 * x_dim

    h1_dim = prep["w1"].shape[1]
    h2_dim = prep["w2"].shape[1]

    bt = _pick_batch_tile(B, batch_tile)
    b_pad = pl.cdiv(B, bt) * bt
    z_in = jnp.pad(z, ((0, b_pad - B), (0, 0))) if b_pad > B else z

    def rep_spec(shape):
        # grid-invariant weight/bias blocks (full array, replicated per tile)
        return pl.BlockSpec(shape, lambda i: (0, 0))

    kernel = functools.partial(generator_kernel, x_dim=x_dim, eps=eps)

    out = pl.pallas_call(
        kernel,
        out_shape=jax.ShapeDtypeStruct((b_pad, n_out), jnp.float32),
        grid_spec=pltpu.PrefetchScalarGridSpec(
            num_scalar_prefetch=0,
            grid=(b_pad // bt,),
            in_specs=[
                pl.BlockSpec((bt, z_dim), lambda i: (i, 0)),          # z tile (f32)
                rep_spec((z_dim, h1_dim)), rep_spec((1, h1_dim)),      # layer1
                rep_spec((h1_dim, h2_dim)), rep_spec((1, h2_dim)),     # layer2
                rep_spec((h2_dim, n_out)), rep_spec((1, n_out)),       # fused heads
            ],
            out_specs=pl.BlockSpec((bt, n_out), lambda i: (i, 0)),
        ),
        compiler_params=pltpu.CompilerParams(
            dimension_semantics=("parallel",),
            # headroom for large batch tiles on v5e's 16 MiB scoped default
            vmem_limit_bytes=48 << 20),
    )(z_in, prep["w1"], prep["b1"], prep["w2"], prep["b2"],
      prep["wh"], prep["bh"])

    x_mean = out[:B, :x_dim]
    x_std = out[:B, x_dim:n_out]
    return x_mean, x_std


def init_params(key, z_dim, x_dim, h1=512, h2=256, bn_eps=1e-5):
    """Deterministic synthetic params.  Linear weights stored as (in, out)."""
    ks = jax.random.split(key, 16)

    def linear(kw, kb, fin, fout):
        bound = 1.0 / jnp.sqrt(fin)
        w = jax.random.uniform(kw, (fin, fout), jnp.float32, -bound, bound)
        b = jax.random.uniform(kb, (1, fout), jnp.float32, -bound, bound)
        return w, b

    def bn_fold(kg, kb, km, kv, f):
        gamma = 1.0 + 0.1 * jax.random.normal(kg, (1, f), jnp.float32)
        beta = 0.1 * jax.random.normal(kb, (1, f), jnp.float32)
        r_mean = 0.1 * jax.random.normal(km, (1, f), jnp.float32)
        r_var = 0.5 + jnp.abs(jax.random.normal(kv, (1, f), jnp.float32))
        scale = gamma / jnp.sqrt(r_var + bn_eps)
        shift = beta - r_mean * scale
        return scale, shift

    w1, b1 = linear(ks[0], ks[1], z_dim, h1)
    s1, t1 = bn_fold(ks[2], ks[3], ks[4], ks[5], h1)
    w2, b2 = linear(ks[6], ks[7], h1, h2)
    s2, t2 = bn_fold(ks[8], ks[9], ks[10], ks[11], h2)
    wm, bm = linear(ks[12], ks[13], h2, x_dim)
    ws, bs = linear(ks[14], ks[15], h2, x_dim)

    return dict(w1=w1, b1=b1, s1=s1, t1=t1,
                w2=w2, b2=b2, s2=s2, t2=t2,
                wm=wm, bm=bm, ws=ws, bs=bs)


def generator_reference(z, p, eps=1e-4):
    """Pure-f32 JAX reference (eval-mode module semantics)."""
    h1 = _leaky_relu((z @ p["w1"] + p["b1"]) * p["s1"] + p["t1"])
    h2 = _leaky_relu((h1 @ p["w2"] + p["b2"]) * p["s2"] + p["t2"])
    x_mean = h2 @ p["wm"] + p["bm"]
    x_std = _softplus(h2 @ p["ws"] + p["bs"]) + eps
    return x_mean, x_std


if __name__ == "__main__":
    key = jax.random.PRNGKey(0)
    kz, kp = jax.random.split(key)

    B, Z_DIM, X_DIM = 16, 64, 32
    z = jax.random.normal(kz, (B, Z_DIM), jnp.float32)
    params = init_params(kp, Z_DIM, X_DIM)

    prep = prepare_params(params)           # one-time weight folding / bf16 cast
    x_mean, x_std = generator_forward(z, prep, eps=1e-4, batch_tile=1024)
    jax.block_until_ready((x_mean, x_std))

    ref_mean, ref_std = generator_reference(z, params, eps=1e-4)
    assert x_mean.shape == (B, X_DIM) and x_std.shape == (B, X_DIM)
    # bf16 MXU inputs (f32 accumulation) => slightly looser tolerance vs f32 ref.
    assert jnp.allclose(x_mean, ref_mean, atol=3e-2, rtol=3e-2)
    assert jnp.allclose(x_std, ref_std, atol=3e-2, rtol=3e-2)
    assert bool(jnp.all(x_std > 0))

    print("KERNEL_OK")
</pallas_src>

<mosaic_0001>
module attributes {stable_mosaic.version = 11 : i64} {
  func.func @generator_kernel(%arg0: i32, %arg1: memref<16x64xf32, #tpu.memory_space<vmem>>, %arg2: memref<64x512xbf16, #tpu.memory_space<vmem>>, %arg3: memref<1x512xf32, #tpu.memory_space<vmem>>, %arg4: memref<512x256xbf16, #tpu.memory_space<vmem>>, %arg5: memref<1x256xf32, #tpu.memory_space<vmem>>, %arg6: memref<256x64xbf16, #tpu.memory_space<vmem>>, %arg7: memref<1x64xf32, #tpu.memory_space<vmem>>, %arg8: memref<16x64xf32, #tpu.memory_space<vmem>>) attributes {dimension_semantics = [#tpu.dimension_semantics<parallel>], iteration_bounds = array<i64: 1>, scalar_prefetch = 0 : i64, scratch_operands = 0 : i64, tpu.core_type = #tpu.core_type<tc>, window_params = [{transform_indices = @transform_0, window_bounds = array<i64: 16, 64>}, {pipeline_mode = #tpu.pipeline_mode<synchronous>, transform_indices = @transform_1, window_bounds = array<i64: 64, 512>}, {pipeline_mode = #tpu.pipeline_mode<synchronous>, transform_indices = @transform_2, window_bounds = array<i64: 1, 512>}, {pipeline_mode = #tpu.pipeline_mode<synchronous>, transform_indices = @transform_3, window_bounds = array<i64: 512, 256>}, {pipeline_mode = #tpu.pipeline_mode<synchronous>, transform_indices = @transform_4, window_bounds = array<i64: 1, 256>}, {pipeline_mode = #tpu.pipeline_mode<synchronous>, transform_indices = @transform_5, window_bounds = array<i64: 256, 64>}, {pipeline_mode = #tpu.pipeline_mode<synchronous>, transform_indices = @transform_6, window_bounds = array<i64: 1, 64>}, {transform_indices = @transform_7, window_bounds = array<i64: 16, 64>}]} {
    %c0 = arith.constant 0 : index
    %c0_0 = arith.constant 0 : index
    %0 = vector.load %arg1[%c0, %c0_0] : memref<16x64xf32, #tpu.memory_space<vmem>>, vector<16x64xf32>
    %1 = arith.truncf %0 : vector<16x64xf32> to vector<16x64xbf16>
    %c0_1 = arith.constant 0 : index
    %c0_2 = arith.constant 0 : index
    %2 = vector.load %arg2[%c0_1, %c0_2] : memref<64x512xbf16, #tpu.memory_space<vmem>>, vector<64x512xbf16>
    %cst = arith.constant dense<0.000000e+00> : vector<16x512xf32>
    %3 = tpu.matmul %1, %2, %cst {dimension_numbers = #tpu.dot_dimension_numbers<[1], [0], [0], [1], [0, 0, 1, 1], [], []>} : vector<16x64xbf16>, vector<64x512xbf16>, vector<16x512xf32> -> vector<16x512xf32>
    %c0_3 = arith.constant 0 : index
    %c0_4 = arith.constant 0 : index
    %4 = vector.load %arg3[%c0_3, %c0_4] : memref<1x512xf32, #tpu.memory_space<vmem>>, vector<1x512xf32>
    %5 = vector.broadcast %4 : vector<1x512xf32> to vector<16x512xf32>
    %6 = arith.addf %3, %5 : vector<16x512xf32>
    %cst_5 = arith.constant 0.000000e+00 : f32
    %7 = vector.broadcast %cst_5 : f32 to vector<16x512xf32>
    %8 = arith.cmpf ogt, %6, %7 : vector<16x512xf32>
    %cst_6 = arith.constant 0.00999999977 : f32
    %9 = vector.broadcast %cst_6 : f32 to vector<16x512xf32>
    %10 = arith.mulf %9, %6 : vector<16x512xf32>
    %11 = arith.select %8, %6, %10 : vector<16x512xi1>, vector<16x512xf32>
    %12 = arith.truncf %11 : vector<16x512xf32> to vector<16x512xbf16>
    %c0_7 = arith.constant 0 : index
    %c0_8 = arith.constant 0 : index
    %13 = vector.load %arg4[%c0_7, %c0_8] : memref<512x256xbf16, #tpu.memory_space<vmem>>, vector<512x256xbf16>
    %cst_9 = arith.constant dense<0.000000e+00> : vector<16x256xf32>
    %14 = tpu.matmul %12, %13, %cst_9 {dimension_numbers = #tpu.dot_dimension_numbers<[1], [0], [0], [1], [0, 0, 1, 1], [], []>} : vector<16x512xbf16>, vector<512x256xbf16>, vector<16x256xf32> -> vector<16x256xf32>
    %c0_10 = arith.constant 0 : index
    %c0_11 = arith.constant 0 : index
    %15 = vector.load %arg5[%c0_10, %c0_11] : memref<1x256xf32, #tpu.memory_space<vmem>>, vector<1x256xf32>
    %16 = vector.broadcast %15 : vector<1x256xf32> to vector<16x256xf32>
    %17 = arith.addf %14, %16 : vector<16x256xf32>
    %cst_12 = arith.constant 0.000000e+00 : f32
    %18 = vector.broadcast %cst_12 : f32 to vector<16x256xf32>
    %19 = arith.cmpf ogt, %17, %18 : vector<16x256xf32>
    %cst_13 = arith.constant 0.00999999977 : f32
    %20 = vector.broadcast %cst_13 : f32 to vector<16x256xf32>
    %21 = arith.mulf %20, %17 : vector<16x256xf32>
    %22 = arith.select %19, %17, %21 : vector<16x256xi1>, vector<16x256xf32>
    %23 = arith.truncf %22 : vector<16x256xf32> to vector<16x256xbf16>
    %c0_14 = arith.constant 0 : index
    %c0_15 = arith.constant 0 : index
    %24 = vector.load %arg6[%c0_14, %c0_15] : memref<256x64xbf16, #tpu.memory_space<vmem>>, vector<256x64xbf16>
    %cst_16 = arith.constant dense<0.000000e+00> : vector<16x64xf32>
    %25 = tpu.matmul %23, %24, %cst_16 {dimension_numbers = #tpu.dot_dimension_numbers<[1], [0], [0], [1], [0, 0, 1, 1], [], []>} : vector<16x256xbf16>, vector<256x64xbf16>, vector<16x64xf32> -> vector<16x64xf32>
    %c0_17 = arith.constant 0 : index
    %c0_18 = arith.constant 0 : index
    %26 = vector.load %arg7[%c0_17, %c0_18] : memref<1x64xf32, #tpu.memory_space<vmem>>, vector<1x64xf32>
    %27 = vector.broadcast %26 : vector<1x64xf32> to vector<16x64xf32>
    %28 = arith.addf %25, %27 : vector<16x64xf32>
    %29 = tpu.iota {dimensions = array<i32: 1>} : vector<16x64xi32>
    %c32_i32 = arith.constant 32 : i32
    %30 = vector.broadcast %c32_i32 : i32 to vector<16x64xi32>
    %31 = arith.cmpi sge, %29, %30 : vector<16x64xi32>
    %cst_19 = arith.constant 2.000000e+01 : f32
    %32 = vector.broadcast %cst_19 : f32 to vector<16x64xf32>
    %33 = arith.cmpf ogt, %28, %32 : vector<16x64xf32>
    %cst_20 = arith.constant 2.000000e+01 : f32
    %34 = vector.broadcast %cst_20 : f32 to vector<16x64xf32>
    %35 = arith.minimumf %28, %34 : vector<16x64xf32>
    %36 = math.exp %35 : vector<16x64xf32>
    %37 = math.log1p %36 : vector<16x64xf32>
    %38 = arith.select %33, %28, %37 : vector<16x64xi1>, vector<16x64xf32>
    %cst_21 = arith.constant 9.99999974E-5 : f32
    %39 = vector.broadcast %cst_21 : f32 to vector<16x64xf32>
    %40 = arith.addf %38, %39 : vector<16x64xf32>
    %41 = arith.select %31, %40, %28 : vector<16x64xi1>, vector<16x64xf32>
    %c0_22 = arith.constant 0 : index
    %c0_23 = arith.constant 0 : index
    %42 = vector.load %arg8[%c0_22, %c0_23] : memref<16x64xf32, #tpu.memory_space<vmem>>, vector<16x64xf32>
    tpu.vector_store %arg8[%c0_22, %c0_23], %41 {strides = array<i32>} : memref<16x64xf32, #tpu.memory_space<vmem>>, vector<16x64xf32>,
    return
  }
  func.func @transform_0(%arg0: i32) -> (i32, i32) {
    %c0_i32 = arith.constant 0 : i32
    %c0_i32_0 = arith.constant 0 : i32
    return %arg0, %c0_i32 : i32, i32
  }
  func.func @transform_1(%arg0: i32) -> (i32, i32) {
    %c0_i32 = arith.constant 0 : i32
    %c0_i32_0 = arith.constant 0 : i32
    %c0_i32_1 = arith.constant 0 : i32
    return %c0_i32, %c0_i32_0 : i32, i32
  }
  func.func @transform_2(%arg0: i32) -> (i32, i32) {
    %c0_i32 = arith.constant 0 : i32
    %c0_i32_0 = arith.constant 0 : i32
    %c0_i32_1 = arith.constant 0 : i32
    return %c0_i32, %c0_i32_0 : i32, i32
  }
  func.func @transform_3(%arg0: i32) -> (i32, i32) {
    %c0_i32 = arith.constant 0 : i32
    %c0_i32_0 = arith.constant 0 : i32
    %c0_i32_1 = arith.constant 0 : i32
    return %c0_i32, %c0_i32_0 : i32, i32
  }
  func.func @transform_4(%arg0: i32) -> (i32, i32) {
    %c0_i32 = arith.constant 0 : i32
    %c0_i32_0 = arith.constant 0 : i32
    %c0_i32_1 = arith.constant 0 : i32
    return %c0_i32, %c0_i32_0 : i32, i32
  }
  func.func @transform_5(%arg0: i32) -> (i32, i32) {
    %c0_i32 = arith.constant 0 : i32
    %c0_i32_0 = arith.constant 0 : i32
    %c0_i32_1 = arith.constant 0 : i32
    return %c0_i32, %c0_i32_0 : i32, i32
  }
  func.func @transform_6(%arg0: i32) -> (i32, i32) {
    %c0_i32 = arith.constant 0 : i32
    %c0_i32_0 = arith.constant 0 : i32
    %c0_i32_1 = arith.constant 0 : i32
    return %c0_i32, %c0_i32_0 : i32, i32
  }
  func.func @transform_7(%arg0: i32) -> (i32, i32) {
    %c0_i32 = arith.constant 0 : i32
    %c0_i32_0 = arith.constant 0 : i32
    return %arg0, %c0_i32 : i32, i32
  }
}

</mosaic_0001>

<llo_original>
// kernel: tpu_custom_call.1
$region0: #{tpu_custom_call.1}
  #allocation0 [shape = 'u32[]', space=smem, size = 0x4, offset = 0x4, fixed_abs, tag = 'smem constant byte address 0x4 - core index']
  #allocation1 [shape = 'u32[144,128]{1,0:T(1,128)}', space=vmem, size = 0x12000, scoped, tag = 'internal scratch']
  %s0 = inlined_call_operand.vmem [shape: f32[16,64], index: 0, kind: input, shape index: {}]
  %s1 = inlined_call_operand.vmem [shape: bf16[64,512], index: 1, kind: input, shape index: {}]
  %s2 = inlined_call_operand.vmem [shape: f32[1,512], index: 2, kind: input, shape index: {}]
  %s3 = inlined_call_operand.hbm [shape: bf16[512,256], index: 3, kind: input, shape index: {}]
  %s4 = inlined_call_operand.vmem [shape: f32[1,256], index: 4, kind: input, shape index: {}]
  %s5 = inlined_call_operand.vmem [shape: bf16[256,64], index: 5, kind: input, shape index: {}]
  %s6 = inlined_call_operand.vmem [shape: f32[1,64], index: 6, kind: input, shape index: {}]
  %s7 = inlined_call_operand.hbm [shape: f32[16,64], index: 7, kind: output, shape index: {}]
  %s8 = sld [smem:[#allocation0]]
  $region42: #{tpu_custom_call.1} parent=0
    _
  %s10 = ssub.s32 1, %s8
  %s11 = scalar_select 0, %s10, %s8
  $region1: #{tpu_custom_call.1} parent=0
    #allocation2 [shape = 'u8[262144]{0}', space=vmem, size = 0x40000, scoped, tag = 'input window, operand 3, single buffered']
    #allocation3 [shape = 's32[1]{0}', space=sflag, size = 0x4, scoped, tag = 'scoped memory for tpu_custom_call.1']
    #allocation4 [shape = 's32[1]{0}', space=sflag, size = 0x4, scoped, tag = 'scoped memory for tpu_custom_call.1']
    #allocation5 [shape = 'u8[8192]{0}', space=vmem, size = 0x2000, scoped, tag = 'output window, operand 0, single buffered']
    %12 = vsyncpa [#allocation3], 0
    %13 = vsyncpa [#allocation4], 0
    // Predicated region
    $region2: #{tpu_custom_call.1} parent=1 // pred_check
      _
    $region3: #{tpu_custom_call.1} parent=1 // pred_check_branch
      %15 = sbr.rel (0) target = $region5
    $region4: #{tpu_custom_call.1} parent=1 // pred_region
      _
    $region5: #{tpu_custom_call.1} parent=1 // pred_fallthru
      _
    // Predicated region
    $region6: #{tpu_custom_call.1} parent=1 // pred_check
      _
    $region7: #{tpu_custom_call.1} parent=1 // pred_check_branch
      %17 = sbr.rel (0) target = $region9
    $region8: #{tpu_custom_call.1} parent=1 // pred_region
      _
    $region9: #{tpu_custom_call.1} parent=1 // pred_fallthru
      _
    // Predicated region
    $region10: #{tpu_custom_call.1} parent=1 // pred_check
      _
    $region11: #{tpu_custom_call.1} parent=1 // pred_check_branch
      %19 = sbr.rel (0) target = $region13
    $region12: #{tpu_custom_call.1} parent=1 // pred_region
      _
    $region13: #{tpu_custom_call.1} parent=1 // pred_fallthru
      _
    // Predicated region
    $region14: #{tpu_custom_call.1} parent=1 // pred_check
      _
    $region15: #{tpu_custom_call.1} parent=1 // pred_check_branch
      %21 = sbr.rel (0) target = $region17
    $region16: #{tpu_custom_call.1} parent=1 // pred_region
      %s23 = ssub.s32 8192, 8192
      %24 = vsyncadd [#allocation3], %s23
      %s25 = sshll.u32 [#allocation2], 4
      %s26 = int_to_ptr.vmem [resolvable:$true] %s25
      %31 = dma.hbm_to_vmem [thread:$0]  %s3, 8192, %s26, [#allocation3], 128, 128, 8
    $region17: #{tpu_custom_call.1} parent=1 // pred_fallthru
      _
    // Predicated region
    $region18: #{tpu_custom_call.1} parent=1 // pred_check
      _
    $region19: #{tpu_custom_call.1} parent=1 // pred_check_branch
      %33 = sbr.rel (0) target = $region21
    $region20: #{tpu_custom_call.1} parent=1 // pred_region
      _
    $region21: #{tpu_custom_call.1} parent=1 // pred_fallthru
      _
    // Predicated region
    $region22: #{tpu_custom_call.1} parent=1 // pred_check
      _
    $region23: #{tpu_custom_call.1} parent=1 // pred_check_branch
      %35 = sbr.rel (0) target = $region25
    $region24: #{tpu_custom_call.1} parent=1 // pred_region
      _
    $region25: #{tpu_custom_call.1} parent=1 // pred_fallthru
      _
    // Predicated region
    $region26: #{tpu_custom_call.1} parent=1 // pred_check
      _
    $region27: #{tpu_custom_call.1} parent=1 // pred_check_branch
      %37 = sbr.rel (0) target = $region29
    $region28: #{tpu_custom_call.1} parent=1 // pred_region
      _
    $region29: #{tpu_custom_call.1} parent=1 // pred_fallthru
      _
    // Predicated region
    $region30: #{tpu_custom_call.1} parent=1 // pred_check
      _
    $region31: #{tpu_custom_call.1} parent=1 // pred_check_branch
      %39 = sbr.rel (0) target = $region33
    $region32: #{tpu_custom_call.1} parent=1 // pred_region
      %40 = dma.done [#allocation3], 8192
    $region33: #{tpu_custom_call.1} parent=1 // pred_fallthru
      _
    %v42 = vld [vmem:[%s0] sm:$0xff]
    %v43 = vld [vmem:[%s0 + $0x8] sm:$0xff]
    %v44 = vpack.c.bf16 %v43, %v42
    %v45 = vld [vmem:[%s1] sm:$0xff]
    %v46 = vld [vmem:[%s1 + $0x8] sm:$0xff]
    %v47 = vld [vmem:[%s1 + $0x10] sm:$0xff]
    %v48 = vld [vmem:[%s1 + $0x18] sm:$0xff]
    %v49 = vld [vmem:[%s1 + $0x20] sm:$0xff]
    %v50 = vld [vmem:[%s1 + $0x28] sm:$0xff]
    %v51 = vld [vmem:[%s1 + $0x30] sm:$0xff]
    %v52 = vld [vmem:[%s1 + $0x38] sm:$0xff]
    %v53 = vld [vmem:[%s1 + $0x40] sm:$0xff]
    %v54 = vld [vmem:[%s1 + $0x48] sm:$0xff]
    %v55 = vld [vmem:[%s1 + $0x50] sm:$0xff]
    %v56 = vld [vmem:[%s1 + $0x58] sm:$0xff]
    %v57 = vld [vmem:[%s1 + $0x60] sm:$0xff]
    %v58 = vld [vmem:[%s1 + $0x68] sm:$0xff]
    %v59 = vld [vmem:[%s1 + $0x70] sm:$0xff]
    %v60 = vld [vmem:[%s1 + $0x78] sm:$0xff]
    %v61 = vld [vmem:[%s2] sm:$0xf]
    %v63 = vlaneseq
    %v64 = vshrl.u32 %v63, 7
    %v65 = vsub.s32 0, %v64
    %v66 = vrot.slane %v61, %v65
    %v67 = vlaneseq
    %v68 = vshrl.u32 %v67, 7
    %v69 = vsub.s32 1, %v68
    %v70 = vrot.slane %v61, %v69
    %v71 = vlaneseq
    %v72 = vshrl.u32 %v71, 7
    %v73 = vsub.s32 2, %v72
    %v74 = vrot.slane %v61, %v73
    %v75 = vlaneseq
    %v76 = vshrl.u32 %v75, 7
    %v77 = vsub.s32 3, %v76
    %v78 = vrot.slane %v61, %v77
    %v99 = vunpack.c.l.b16 %v45
    %v100 = vunpack.c.h.b16 %v45
    %v101 = vunpack.c.l.b16 %v46
    %v102 = vunpack.c.h.b16 %v46
    %v103 = vunpack.c.l.b16 %v47
    %v104 = vunpack.c.h.b16 %v47
    %v105 = vunpack.c.l.b16 %v48
    %v106 = vunpack.c.h.b16 %v48
    %v107 = vunpack.c.l.b16 %v49
    %v108 = vunpack.c.h.b16 %v49
    %v109 = vunpack.c.l.b16 %v50
    %v110 = vunpack.c.h.b16 %v50
    %v111 = vunpack.c.l.b16 %v51
    %v112 = vunpack.c.h.b16 %v51
    %v113 = vunpack.c.l.b16 %v52
    %v114 = vunpack.c.h.b16 %v52
    %v115 = vunpack.c.l.b16 %v53
    %v116 = vunpack.c.h.b16 %v53
    %v117 = vunpack.c.l.b16 %v54
    %v118 = vunpack.c.h.b16 %v54
    %v119 = vunpack.c.l.b16 %v55
    %v120 = vunpack.c.h.b16 %v55
    %v121 = vunpack.c.l.b16 %v56
    %v122 = vunpack.c.h.b16 %v56
    %v123 = vunpack.c.l.b16 %v57
    %v124 = vunpack.c.h.b16 %v57
    %v125 = vunpack.c.l.b16 %v58
    %v126 = vunpack.c.h.b16 %v58
    %v127 = vunpack.c.l.b16 %v59
    %v128 = vunpack.c.h.b16 %v59
    %v129 = vunpack.c.l.b16 %v60
    %v130 = vunpack.c.h.b16 %v60
    %v131 = vpack.c.b16 %v103, %v99
    %v132 = vpack.c.b16 %v104, %v100
    %v133 = vpack.c.b16 %v105, %v101
    %v134 = vpack.c.b16 %v106, %v102
    %v135 = vpack.c.b16 %v111, %v107
    %v136 = vpack.c.b16 %v112, %v108
    %v137 = vpack.c.b16 %v113, %v109
    %v138 = vpack.c.b16 %v114, %v110
    %v139 = vpack.c.b16 %v119, %v115
    %v140 = vpack.c.b16 %v120, %v116
    %v141 = vpack.c.b16 %v121, %v117
    %v142 = vpack.c.b16 %v122, %v118
    %v143 = vpack.c.b16 %v127, %v123
    %v144 = vpack.c.b16 %v128, %v124
    %v145 = vpack.c.b16 %v129, %v125
    %v146 = vpack.c.b16 %v130, %v126
    %vm163 = vcmask 523264
    %v165 = vsel %vm163, %v44, 0
    %167 = vmatprep.subr.bf16.mxu0 %v132
    %168 = vmatpush1.bf16.msra.mxu0 %v131
    %169 = vmatprep.subr.bf16.mxu0 %v136
    %170 = vmatpush1.bf16.msra.mxu0 %v135
    %171 = vmatprep.subr.bf16.mxu0 %v140
    %172 = vmatpush1.bf16.msra.mxu0 %v139
    %173 = vmatprep.subr.bf16.mxu0 %v144
    %174 = vmatpush1.bf16.msra.mxu0 %v143
    %175 = vmatprep.subr.bf16.mxu0 0
    %176 = vmatpush1.bf16.msra.mxu0 0
    %177 = vmatprep.subr.bf16.mxu0 0
    %178 = vmatpush1.bf16.msra.mxu0 0
    %179 = vmatprep.subr.bf16.mxu0 0
    %180 = vmatpush1.bf16.msra.mxu0 0
    %181 = vmatprep.subr.bf16.mxu0 0
    %182 = vmatpush1.bf16.msra.mxu0 0
    %183 = vmatprep.subr.bf16.mxu0 0
    %184 = vmatpush1.bf16.msra.mxu0 0
    %185 = vmatprep.subr.bf16.mxu0 0
    %186 = vmatpush1.bf16.msra.mxu0 0
    %187 = vmatprep.subr.bf16.mxu0 0
    %188 = vmatpush1.bf16.msra.mxu0 0
    %189 = vmatprep.subr.bf16.mxu0 0
    %190 = vmatpush1.bf16.msra.mxu0 0
    %191 = vmatprep.subr.bf16.mxu0 0
    %192 = vmatpush1.bf16.msra.mxu0 0
    %193 = vmatprep.subr.bf16.mxu0 0
    %194 = vmatpush1.bf16.msra.mxu0 0
    %195 = vmatprep.subr.bf16.mxu0 0
    %196 = vmatpush1.bf16.msra.mxu0 0
    %197 = vmatprep.subr.bf16.mxu0 0
    %198 = vmatpush1.bf16.msra.mxu0 0
    %199 = vmatprep.mubr.bf16.mxu0 0
    %200 = vmatmul.mubr.bf16.gmra.mrb[0].mxu0 %v165
    %v201 = vpop.f32.mrb[0].mxu0
    %v202 = vadd.f32 %v66, %v201
    %v203 = vpop.f32.mrb[0].mxu0
    %v204 = vadd.f32 %v70, %v203
    %v205 = vpop.f32.mrb[0].mxu0
    %v206 = vadd.f32 %v66, %v205
    %v207 = vpop.f32.mrb[0].mxu0
    %v208 = vadd.f32 %v70, %v207
    %209 = vdwg.mxu0
    %210 = vmatprep.subr.bf16.mxu0 %v134
    %211 = vmatpush1.bf16.msra.mxu0 %v133
    %212 = vmatprep.subr.bf16.mxu0 %v138
    %213 = vmatpush1.bf16.msra.mxu0 %v137
    %214 = vmatprep.subr.bf16.mxu0 %v142
    %215 = vmatpush1.bf16.msra.mxu0 %v141
    %216 = vmatprep.subr.bf16.mxu0 %v146
    %217 = vmatpush1.bf16.msra.mxu0 %v145
    %218 = vmatprep.subr.bf16.mxu0 0
    %219 = vmatpush1.bf16.msra.mxu0 0
    %220 = vmatprep.subr.bf16.mxu0 0
    %221 = vmatpush1.bf16.msra.mxu0 0
    %222 = vmatprep.subr.bf16.mxu0 0
    %223 = vmatpush1.bf16.msra.mxu0 0
    %224 = vmatprep.subr.bf16.mxu0 0
    %225 = vmatpush1.bf16.msra.mxu0 0
    %226 = vmatprep.subr.bf16.mxu0 0
    %227 = vmatpush1.bf16.msra.mxu0 0
    %228 = vmatprep.subr.bf16.mxu0 0
    %229 = vmatpush1.bf16.msra.mxu0 0
    %230 = vmatprep.subr.bf16.mxu0 0
    %231 = vmatpush1.bf16.msra.mxu0 0
    %232 = vmatprep.subr.bf16.mxu0 0
    %233 = vmatpush1.bf16.msra.mxu0 0
    %234 = vmatprep.subr.bf16.mxu0 0
    %235 = vmatpush1.bf16.msra.mxu0 0
    %236 = vmatprep.subr.bf16.mxu0 0
    %237 = vmatpush1.bf16.msra.mxu0 0
    %238 = vmatprep.subr.bf16.mxu0 0
    %239 = vmatpush1.bf16.msra.mxu0 0
    %240 = vmatprep.subr.bf16.mxu0 0
    %241 = vmatpush1.bf16.msra.mxu0 0
    %242 = vmatprep.mubr.bf16.mxu0 0
    %243 = vmatmul.mubr.bf16.gmra.mrb[0].mxu0 %v165
    %v244 = vpop.f32.mrb[0].mxu0
    %v245 = vadd.f32 %v74, %v244
    %v246 = vpop.f32.mrb[0].mxu0
    %v247 = vadd.f32 %v78, %v246
    %v248 = vpop.f32.mrb[0].mxu0
    %v249 = vadd.f32 %v74, %v248
    %v250 = vpop.f32.mrb[0].mxu0
    %v251 = vadd.f32 %v78, %v250
    %252 = vdwg.mxu0
    %vm253 = vcmp.gt.f32.partialorder %v202, 0.0
    %vm254 = vcmp.gt.f32.partialorder %v204, 0.0
    %vm255 = vcmp.gt.f32.partialorder %v245, 0.0
    %vm256 = vcmp.gt.f32.partialorder %v247, 0.0
    %vm257 = vcmp.gt.f32.partialorder %v206, 0.0
    %vm258 = vcmp.gt.f32.partialorder %v208, 0.0
    %vm259 = vcmp.gt.f32.partialorder %v249, 0.0
    %vm260 = vcmp.gt.f32.partialorder %v251, 0.0
    %v261 = vmul.f32 %v202, 0.01
    %v262 = vmul.f32 %v204, 0.01
    %v263 = vmul.f32 %v245, 0.01
    %v264 = vmul.f32 %v247, 0.01
    %v265 = vmul.f32 %v206, 0.01
    %v266 = vmul.f32 %v208, 0.01
    %v267 = vmul.f32 %v249, 0.01
    %v268 = vmul.f32 %v251, 0.01
    %v269 = vsel %vm253, %v202, %v261
    %v270 = vsel %vm254, %v204, %v262
    %v271 = vsel %vm255, %v245, %v263
    %v272 = vsel %vm256, %v247, %v264
    %v273 = vsel %vm257, %v206, %v265
    %v274 = vsel %vm258, %v208, %v266
    %v275 = vsel %vm259, %v249, %v267
    %v276 = vsel %vm260, %v251, %v268
    %v277 = vpack.c.bf16 %v273, %v269
    %v278 = vpack.c.bf16 %v274, %v270
    %v279 = vpack.c.bf16 %v275, %v271
    %v280 = vpack.c.bf16 %v276, %v272
    %v281 = vld [vmem:[#allocation2] sm:$0xff]
    %v282 = vld [vmem:[#allocation2 + $0x8] sm:$0xff]
    %v283 = vld [vmem:[#allocation2 + $0x10] sm:$0xff]
    %v284 = vld [vmem:[#allocation2 + $0x18] sm:$0xff]
    %v285 = vld [vmem:[#allocation2 + $0x20] sm:$0xff]
    %v286 = vld [vmem:[#allocation2 + $0x28] sm:$0xff]
    %v287 = vld [vmem:[#allocation2 + $0x30] sm:$0xff]
    %v288 = vld [vmem:[#allocation2 + $0x38] sm:$0xff]
    %v289 = vld [vmem:[#allocation2 + $0x40] sm:$0xff]
    %v290 = vld [vmem:[#allocation2 + $0x48] sm:$0xff]
    %v291 = vld [vmem:[#allocation2 + $0x50] sm:$0xff]
    %v292 = vld [vmem:[#allocation2 + $0x58] sm:$0xff]
    %v293 = vld [vmem:[#allocation2 + $0x60] sm:$0xff]
    %v294 = vld [vmem:[#allocation2 + $0x68] sm:$0xff]
    %v295 = vld [vmem:[#allocation2 + $0x70] sm:$0xff]
    %v296 = vld [vmem:[#allocation2 + $0x78] sm:$0xff]
    %v297 = vld [vmem:[#allocation2 + $0x80] sm:$0xff]
    %v298 = vld [vmem:[#allocation2 + $0x88] sm:$0xff]
    %v299 = vld [vmem:[#allocation2 + $0x90] sm:$0xff]
    %v300 = vld [vmem:[#allocation2 + $0x98] sm:$0xff]
    %v301 = vld [vmem:[#allocation2 + $0xa0] sm:$0xff]
    %v302 = vld [vmem:[#allocation2 + $0xa8] sm:$0xff]
    %v303 = vld [vmem:[#allocation2 + $0xb0] sm:$0xff]
    %v304 = vld [vmem:[#allocation2 + $0xb8] sm:$0xff]
    %v305 = vld [vmem:[#allocation2 + $0xc0] sm:$0xff]
    %v306 = vld [vmem:[#allocation2 + $0xc8] sm:$0xff]
    %v307 = vld [vmem:[#allocation2 + $0xd0] sm:$0xff]
    %v308 = vld [vmem:[#allocation2 + $0xd8] sm:$0xff]
    %v309 = vld [vmem:[#allocation2 + $0xe0] sm:$0xff]
    %v310 = vld [vmem:[#allocation2 + $0xe8] sm:$0xff]
    %v311 = vld [vmem:[#allocation2 + $0xf0] sm:$0xff]
    %v312 = vld [vmem:[#allocation2 + $0xf8] sm:$0xff]
    %v313 = vld [vmem:[#allocation2 + $0x100] sm:$0xff]
    %v314 = vld [vmem:[#allocation2 + $0x108] sm:$0xff]
    %v315 = vld [vmem:[#allocation2 + $0x110] sm:$0xff]
    %v316 = vld [vmem:[#allocation2 + $0x118] sm:$0xff]
    %v317 = vld [vmem:[#allocation2 + $0x120] sm:$0xff]
    %v318 = vld [vmem:[#allocation2 + $0x128] sm:$0xff]
    %v319 = vld [vmem:[#allocation2 + $0x130] sm:$0xff]
    %v320 = vld [vmem:[#allocation2 + $0x138] sm:$0xff]
    %v321 = vld [vmem:[#allocation2 + $0x140] sm:$0xff]
    %v322 = vld [vmem:[#allocation2 + $0x148] sm:$0xff]
    %v323 = vld [vmem:[#allocation2 + $0x150] sm:$0xff]
    %v324 = vld [vmem:[#allocation2 + $0x158] sm:$0xff]
    %v325 = vld [vmem:[#allocation2 + $0x160] sm:$0xff]
    %v326 = vld [vmem:[#allocation2 + $0x168] sm:$0xff]
    %v327 = vld [vmem:[#allocation2 + $0x170] sm:$0xff]
    %v328 = vld [vmem:[#allocation2 + $0x178] sm:$0xff]
    %v329 = vld [vmem:[#allocation2 + $0x180] sm:$0xff]
    %v330 = vld [vmem:[#allocation2 + $0x188] sm:$0xff]
    %v331 = vld [vmem:[#allocation2 + $0x190] sm:$0xff]
    %v332 = vld [vmem:[#allocation2 + $0x198] sm:$0xff]
    %v333 = vld [vmem:[#allocation2 + $0x1a0] sm:$0xff]
    %v334 = vld [vmem:[#allocation2 + $0x1a8] sm:$0xff]
    %v335 = vld [vmem:[#allocation2 + $0x1b0] sm:$0xff]
    %v336 = vld [vmem:[#allocation2 + $0x1b8] sm:$0xff]
    %v337 = vld [vmem:[#allocation2 + $0x1c0] sm:$0xff]
    %v338 = vld [vmem:[#allocation2 + $0x1c8] sm:$0xff]
    %v339 = vld [vmem:[#allocation2 + $0x1d0] sm:$0xff]
    %v340 = vld [vmem:[#allocation2 + $0x1d8] sm:$0xff]
    %v341 = vld [vmem:[#allocation2 + $0x1e0] sm:$0xff]
    %v342 = vld [vmem:[#allocation2 + $0x1e8] sm:$0xff]
    %v343 = vld [vmem:[#allocation2 + $0x1f0] sm:$0xff]
    %v344 = vld [vmem:[#allocation2 + $0x1f8] sm:$0xff]
    %v345 = vld [vmem:[%s4] sm:$0x3]
    %v347 = vlaneseq
    %v348 = vshrl.u32 %v347, 7
    %v349 = vsub.s32 0, %v348
    %v350 = vrot.slane %v345, %v349
    %v351 = vlaneseq
    %v352 = vshrl.u32 %v351, 7
    %v353 = vsub.s32 1, %v352
    %v354 = vrot.slane %v345, %v353
    %v421 = vunpack.c.l.b16 %v281
    %v422 = vunpack.c.h.b16 %v281
    %v423 = vunpack.c.l.b16 %v282
    %v424 = vunpack.c.h.b16 %v282
    %v425 = vunpack.c.l.b16 %v283
    %v426 = vunpack.c.h.b16 %v283
    %v427 = vunpack.c.l.b16 %v284
    %v428 = vunpack.c.h.b16 %v284
    %v429 = vunpack.c.l.b16 %v285
    %v430 = vunpack.c.h.b16 %v285
    %v431 = vunpack.c.l.b16 %v286
    %v432 = vunpack.c.h.b16 %v286
    %v433 = vunpack.c.l.b16 %v287
    %v434 = vunpack.c.h.b16 %v287
    %v435 = vunpack.c.l.b16 %v288
    %v436 = vunpack.c.h.b16 %v288
    %v437 = vunpack.c.l.b16 %v289
    %v438 = vunpack.c.h.b16 %v289
    %v439 = vunpack.c.l.b16 %v290
    %v440 = vunpack.c.h.b16 %v290
    %v441 = vunpack.c.l.b16 %v291
    %v442 = vunpack.c.h.b16 %v291
    %v443 = vunpack.c.l.b16 %v292
    %v444 = vunpack.c.h.b16 %v292
    %v445 = vunpack.c.l.b16 %v293
    %v446 = vunpack.c.h.b16 %v293
    %v447 = vunpack.c.l.b16 %v294
    %v448 = vunpack.c.h.b16 %v294
    %v449 = vunpack.c.l.b16 %v295
    %v450 = vunpack.c.h.b16 %v295
    %v451 = vunpack.c.l.b16 %v296
    %v452 = vunpack.c.h.b16 %v296
    %v453 = vunpack.c.l.b16 %v297
    %v454 = vunpack.c.h.b16 %v297
    %v455 = vunpack.c.l.b16 %v298
    %v456 = vunpack.c.h.b16 %v298
    %v457 = vunpack.c.l.b16 %v299
    %v458 = vunpack.c.h.b16 %v299
    %v459 = vunpack.c.l.b16 %v300
    %v460 = vunpack.c.h.b16 %v300
    %v461 = vunpack.c.l.b16 %v301
    %v462 = vunpack.c.h.b16 %v301
    %v463 = vunpack.c.l.b16 %v302
    %v464 = vunpack.c.h.b16 %v302
    %v465 = vunpack.c.l.b16 %v303
    %v466 = vunpack.c.h.b16 %v303
    %v467 = vunpack.c.l.b16 %v304
    %v468 = vunpack.c.h.b16 %v304
    %v469 = vunpack.c.l.b16 %v305
    %v470 = vunpack.c.h.b16 %v305
    %v471 = vunpack.c.l.b16 %v306
    %v472 = vunpack.c.h.b16 %v306
    %v473 = vunpack.c.l.b16 %v307
    %v474 = vunpack.c.h.b16 %v307
    %v475 = vunpack.c.l.b16 %v308
    %v476 = vunpack.c.h.b16 %v308
    %v477 = vunpack.c.l.b16 %v309
    %v478 = vunpack.c.h.b16 %v309
    %v479 = vunpack.c.l.b16 %v310
    %v480 = vunpack.c.h.b16 %v310
    %v481 = vunpack.c.l.b16 %v311
    %v482 = vunpack.c.h.b16 %v311
    %v483 = vunpack.c.l.b16 %v312
    %v484 = vunpack.c.h.b16 %v312
    %v485 = vunpack.c.l.b16 %v313
    %v486 = vunpack.c.h.b16 %v313
    %v487 = vunpack.c.l.b16 %v314
    %v488 = vunpack.c.h.b16 %v314
    %v489 = vunpack.c.l.b16 %v315
    %v490 = vunpack.c.h.b16 %v315
    %v491 = vunpack.c.l.b16 %v316
    %v492 = vunpack.c.h.b16 %v316
    %v493 = vunpack.c.l.b16 %v317
    %v494 = vunpack.c.h.b16 %v317
    %v495 = vunpack.c.l.b16 %v318
    %v496 = vunpack.c.h.b16 %v318
    %v497 = vunpack.c.l.b16 %v319
    %v498 = vunpack.c.h.b16 %v319
    %v499 = vunpack.c.l.b16 %v320
    %v500 = vunpack.c.h.b16 %v320
    %v501 = vunpack.c.l.b16 %v321
    %v502 = vunpack.c.h.b16 %v321
    %v503 = vunpack.c.l.b16 %v322
    %v504 = vunpack.c.h.b16 %v322
    %v505 = vunpack.c.l.b16 %v323
    %v506 = vunpack.c.h.b16 %v323
    %v507 = vunpack.c.l.b16 %v324
    %v508 = vunpack.c.h.b16 %v324
    %v509 = vunpack.c.l.b16 %v325
    %v510 = vunpack.c.h.b16 %v325
    %v511 = vunpack.c.l.b16 %v326
    %v512 = vunpack.c.h.b16 %v326
    %v513 = vunpack.c.l.b16 %v327
    %v514 = vunpack.c.h.b16 %v327
    %v515 = vunpack.c.l.b16 %v328
    %v516 = vunpack.c.h.b16 %v328
    %v517 = vunpack.c.l.b16 %v329
    %v518 = vunpack.c.h.b16 %v329
    %v519 = vunpack.c.l.b16 %v330
    %v520 = vunpack.c.h.b16 %v330
    %v521 = vunpack.c.l.b16 %v331
    %v522 = vunpack.c.h.b16 %v331
    %v523 = vunpack.c.l.b16 %v332
    %v524 = vunpack.c.h.b16 %v332
    %v525 = vunpack.c.l.b16 %v333
    %v526 = vunpack.c.h.b16 %v333
    %v527 = vunpack.c.l.b16 %v334
    %v528 = vunpack.c.h.b16 %v334
    %v529 = vunpack.c.l.b16 %v335
    %v530 = vunpack.c.h.b16 %v335
    %v531 = vunpack.c.l.b16 %v336
    %v532 = vunpack.c.h.b16 %v336
    %v533 = vunpack.c.l.b16 %v337
    %v534 = vunpack.c.h.b16 %v337
    %v535 = vunpack.c.l.b16 %v338
    %v536 = vunpack.c.h.b16 %v338
    %v537 = vunpack.c.l.b16 %v339
    %v538 = vunpack.c.h.b16 %v339
    %v539 = vunpack.c.l.b16 %v340
    %v540 = vunpack.c.h.b16 %v340
    %v541 = vunpack.c.l.b16 %v341
    %v542 = vunpack.c.h.b16 %v341
    %v543 = vunpack.c.l.b16 %v342
    %v544 = vunpack.c.h.b16 %v342
    %v545 = vunpack.c.l.b16 %v343
    %v546 = vunpack.c.h.b16 %v343
    %v547 = vunpack.c.l.b16 %v344
    %v548 = vunpack.c.h.b16 %v344
    %v549 = vpack.c.b16 %v423, %v421
    %v550 = vpack.c.b16 %v424, %v422
    %v551 = vpack.c.b16 %v427, %v425
    %v552 = vpack.c.b16 %v428, %v426
    %v553 = vpack.c.b16 %v431, %v429
    %v554 = vpack.c.b16 %v432, %v430
    %v555 = vpack.c.b16 %v435, %v433
    %v556 = vpack.c.b16 %v436, %v434
    %v557 = vpack.c.b16 %v439, %v437
    %v558 = vpack.c.b16 %v440, %v438
    %v559 = vpack.c.b16 %v443, %v441
    %v560 = vpack.c.b16 %v444, %v442
    %v561 = vpack.c.b16 %v447, %v445
    %v562 = vpack.c.b16 %v448, %v446
    %v563 = vpack.c.b16 %v451, %v449
    %v564 = vpack.c.b16 %v452, %v450
    %v565 = vpack.c.b16 %v455, %v453
    %v566 = vpack.c.b16 %v456, %v454
    %v567 = vpack.c.b16 %v459, %v457
    %v568 = vpack.c.b16 %v460, %v458
    %v569 = vpack.c.b16 %v463, %v461
    %v570 = vpack.c.b16 %v464, %v462
    %v571 = vpack.c.b16 %v467, %v465
    %v572 = vpack.c.b16 %v468, %v466
    %v573 = vpack.c.b16 %v471, %v469
    %v574 = vpack.c.b16 %v472, %v470
    %v575 = vpack.c.b16 %v475, %v473
    %v576 = vpack.c.b16 %v476, %v474
    %v577 = vpack.c.b16 %v479, %v477
    %v578 = vpack.c.b16 %v480, %v478
    %v579 = vpack.c.b16 %v483, %v481
    %v580 = vpack.c.b16 %v484, %v482
    %v581 = vpack.c.b16 %v487, %v485
    %v582 = vpack.c.b16 %v488, %v486
    %v583 = vpack.c.b16 %v491, %v489
    %v584 = vpack.c.b16 %v492, %v490
    %v585 = vpack.c.b16 %v495, %v493
    %v586 = vpack.c.b16 %v496, %v494
    %v587 = vpack.c.b16 %v499, %v497
    %v588 = vpack.c.b16 %v500, %v498
    %v589 = vpack.c.b16 %v503, %v501
    %v590 = vpack.c.b16 %v504, %v502
    %v591 = vpack.c.b16 %v507, %v505
    %v592 = vpack.c.b16 %v508, %v506
    %v593 = vpack.c.b16 %v511, %v509
    %v594 = vpack.c.b16 %v512, %v510
    %v595 = vpack.c.b16 %v515, %v513
    %v596 = vpack.c.b16 %v516, %v514
    %v597 = vpack.c.b16 %v519, %v517
    %v598 = vpack.c.b16 %v520, %v518
    %v599 = vpack.c.b16 %v523, %v521
    %v600 = vpack.c.b16 %v524, %v522
    %v601 = vpack.c.b16 %v527, %v525
    %v602 = vpack.c.b16 %v528, %v526
    %v603 = vpack.c.b16 %v531, %v529
    %v604 = vpack.c.b16 %v532, %v530
    %v605 = vpack.c.b16 %v535, %v533
    %v606 = vpack.c.b16 %v536, %v534
    %v607 = vpack.c.b16 %v539, %v537
    %v608 = vpack.c.b16 %v540, %v538
    %v609 = vpack.c.b16 %v543, %v541
    %v610 = vpack.c.b16 %v544, %v542
    %v611 = vpack.c.b16 %v547, %v545
    %v612 = vpack.c.b16 %v548, %v546
    %677 = vmatprep.subr.bf16.mxu0 %v550
    %678 = vmatpush1.bf16.msra.mxu0 %v549
    %679 = vmatprep.subr.bf16.mxu0 %v552
    %680 = vmatpush1.bf16.msra.mxu0 %v551
    %681 = vmatprep.subr.bf16.mxu0 %v554
    %682 = vmatpush1.bf16.msra.mxu0 %v553
    %683 = vmatprep.subr.bf16.mxu0 %v556
    %684 = vmatpush1.bf16.msra.mxu0 %v555
    %685 = vmatprep.subr.bf16.mxu0 %v558
    %686 = vmatpush1.bf16.msra.mxu0 %v557
    %687 = vmatprep.subr.bf16.mxu0 %v560
    %688 = vmatpush1.bf16.msra.mxu0 %v559
    %689 = vmatprep.subr.bf16.mxu0 %v562
    %690 = vmatpush1.bf16.msra.mxu0 %v561
    %691 = vmatprep.subr.bf16.mxu0 %v564
    %692 = vmatpush1.bf16.msra.mxu0 %v563
    %693 = vmatprep.subr.bf16.mxu0 %v566
    %694 = vmatpush1.bf16.msra.mxu0 %v565
    %695 = vmatprep.subr.bf16.mxu0 %v568
    %696 = vmatpush1.bf16.msra.mxu0 %v567
    %697 = vmatprep.subr.bf16.mxu0 %v570
    %698 = vmatpush1.bf16.msra.mxu0 %v569
    %699 = vmatprep.subr.bf16.mxu0 %v572
    %700 = vmatpush1.bf16.msra.mxu0 %v571
    %701 = vmatprep.subr.bf16.mxu0 %v574
    %702 = vmatpush1.bf16.msra.mxu0 %v573
    %703 = vmatprep.subr.bf16.mxu0 %v576
    %704 = vmatpush1.bf16.msra.mxu0 %v575
    %705 = vmatprep.subr.bf16.mxu0 %v578
    %706 = vmatpush1.bf16.msra.mxu0 %v577
    %707 = vmatprep.subr.bf16.mxu0 %v580
    %708 = vmatpush1.bf16.msra.mxu0 %v579
    %709 = vmatprep.mubr.bf16.mxu0 %v278
    %710 = vmatmul.mubr.bf16.gmra.mrb[0].mxu0 %v277
    %v711 = vpop.f32.mrb[0].mxu0
    %v712 = vadd.f32 %v350, %v711
    %v713 = vpop.f32.mrb[0].mxu0
    %v714 = vadd.f32 %v354, %v713
    %v715 = vpop.f32.mrb[0].mxu0
    %v716 = vadd.f32 %v350, %v715
    %v717 = vpop.f32.mrb[0].mxu0
    %v718 = vadd.f32 %v354, %v717
    %719 = vdwg.mxu0
    %720 = vmatprep.subr.bf16.mxu0 %v582
    %721 = vmatpush1.bf16.msra.mxu0 %v581
    %722 = vmatprep.subr.bf16.mxu0 %v584
    %723 = vmatpush1.bf16.msra.mxu0 %v583
    %724 = vmatprep.subr.bf16.mxu0 %v586
    %725 = vmatpush1.bf16.msra.mxu0 %v585
    %726 = vmatprep.subr.bf16.mxu0 %v588
    %727 = vmatpush1.bf16.msra.mxu0 %v587
    %728 = vmatprep.subr.bf16.mxu0 %v590
    %729 = vmatpush1.bf16.msra.mxu0 %v589
    %730 = vmatprep.subr.bf16.mxu0 %v592
    %731 = vmatpush1.bf16.msra.mxu0 %v591
    %732 = vmatprep.subr.bf16.mxu0 %v594
    %733 = vmatpush1.bf16.msra.mxu0 %v593
    %734 = vmatprep.subr.bf16.mxu0 %v596
    %735 = vmatpush1.bf16.msra.mxu0 %v595
    %736 = vmatprep.subr.bf16.mxu0 %v598
    %737 = vmatpush1.bf16.msra.mxu0 %v597
    %738 = vmatprep.subr.bf16.mxu0 %v600
    %739 = vmatpush1.bf16.msra.mxu0 %v599
    %740 = vmatprep.subr.bf16.mxu0 %v602
    %741 = vmatpush1.bf16.msra.mxu0 %v601
    %742 = vmatprep.subr.bf16.mxu0 %v604
    %743 = vmatpush1.bf16.msra.mxu0 %v603
    %744 = vmatprep.subr.bf16.mxu0 %v606
    %745 = vmatpush1.bf16.msra.mxu0 %v605
    %746 = vmatprep.subr.bf16.mxu0 %v608
    %747 = vmatpush1.bf16.msra.mxu0 %v607
    %748 = vmatprep.subr.bf16.mxu0 %v610
    %749 = vmatpush1.bf16.msra.mxu0 %v609
    %750 = vmatprep.subr.bf16.mxu0 %v612
    %751 = vmatpush1.bf16.msra.mxu0 %v611
    %752 = vmatprep.mubr.bf16.mxu0 %v280
    %753 = vmatmul.mubr.bf16.gmra.mrb[0].mxu0 %v279
    %v754 = vpop.f32.mrb[0].mxu0
    %v755 = vadd.f32 %v712, %v754
    %v756 = vpop.f32.mrb[0].mxu0
    %v757 = vadd.f32 %v714, %v756
    %v758 = vpop.f32.mrb[0].mxu0
    %v759 = vadd.f32 %v716, %v758
    %v760 = vpop.f32.mrb[0].mxu0
    %v761 = vadd.f32 %v718, %v760
    %762 = vdwg.mxu0
    %vm763 = vcmp.gt.f32.partialorder %v755, 0.0
    %vm764 = vcmp.gt.f32.partialorder %v757, 0.0
    %vm765 = vcmp.gt.f32.partialorder %v759, 0.0
    %vm766 = vcmp.gt.f32.partialorder %v761, 0.0
    %v767 = vmul.f32 %v755, 0.01
    %v768 = vmul.f32 %v757, 0.01
    %v769 = vmul.f32 %v759, 0.01
    %v770 = vmul.f32 %v761, 0.01
    %v771 = vsel %vm763, %v755, %v767
    %v772 = vsel %vm764, %v757, %v768
    %v773 = vsel %vm765, %v759, %v769
    %v774 = vsel %vm766, %v761, %v770
    %v775 = vpack.c.bf16 %v773, %v771
    %v776 = vpack.c.bf16 %v774, %v772
    %v777 = vld [vmem:[%s5] sm:$0xf]
    %v778 = vld [vmem:[%s5 + $0x4] sm:$0xf]
    %v779 = vld [vmem:[%s5 + $0x8] sm:$0xf]
    %v780 = vld [vmem:[%s5 + $0xc] sm:$0xf]
    %v781 = vld [vmem:[%s5 + $0x10] sm:$0xf]
    %v782 = vld [vmem:[%s5 + $0x14] sm:$0xf]
    %v783 = vld [vmem:[%s5 + $0x18] sm:$0xf]
    %v784 = vld [vmem:[%s5 + $0x1c] sm:$0xf]
    %v785 = vld [vmem:[%s5 + $0x20] sm:$0xf]
    %v786 = vld [vmem:[%s5 + $0x24] sm:$0xf]
    %v787 = vld [vmem:[%s5 + $0x28] sm:$0xf]
    %v788 = vld [vmem:[%s5 + $0x2c] sm:$0xf]
    %v789 = vld [vmem:[%s5 + $0x30] sm:$0xf]
    %v790 = vld [vmem:[%s5 + $0x34] sm:$0xf]
    %v791 = vld [vmem:[%s5 + $0x38] sm:$0xf]
    %v792 = vld [vmem:[%s5 + $0x3c] sm:$0xf]
    %v793 = vld [vmem:[%s5 + $0x40] sm:$0xf]
    %v794 = vld [vmem:[%s5 + $0x44] sm:$0xf]
    %v795 = vld [vmem:[%s5 + $0x48] sm:$0xf]
    %v796 = vld [vmem:[%s5 + $0x4c] sm:$0xf]
    %v797 = vld [vmem:[%s5 + $0x50] sm:$0xf]
    %v798 = vld [vmem:[%s5 + $0x54] sm:$0xf]
    %v799 = vld [vmem:[%s5 + $0x58] sm:$0xf]
    %v800 = vld [vmem:[%s5 + $0x5c] sm:$0xf]
    %v801 = vld [vmem:[%s5 + $0x60] sm:$0xf]
    %v802 = vld [vmem:[%s5 + $0x64] sm:$0xf]
    %v803 = vld [vmem:[%s5 + $0x68] sm:$0xf]
    %v804 = vld [vmem:[%s5 + $0x6c] sm:$0xf]
    %v805 = vld [vmem:[%s5 + $0x70] sm:$0xf]
    %v806 = vld [vmem:[%s5 + $0x74] sm:$0xf]
    %v807 = vld [vmem:[%s5 + $0x78] sm:$0xf]
    %v808 = vld [vmem:[%s5 + $0x7c] sm:$0xf]
    %v809 = vld [vmem:[%s6] sm:$0x1]
    %v811 = vlaneseq
    %v812 = vshrl.u32 %v811, 7
    %v813 = vsub.s32 0, %v812
    %v814 = vrot.slane %v809, %v813
    %v848 = vunpack.c.l.b16 %v777
    %v849 = vunpack.c.l.b16 %v778
    %v850 = vunpack.c.l.b16 %v779
    %v851 = vunpack.c.l.b16 %v780
    %v852 = vunpack.c.l.b16 %v781
    %v853 = vunpack.c.l.b16 %v782
    %v854 = vunpack.c.l.b16 %v783
    %v855 = vunpack.c.l.b16 %v784
    %v856 = vunpack.c.l.b16 %v785
    %v857 = vunpack.c.l.b16 %v786
    %v858 = vunpack.c.l.b16 %v787
    %v859 = vunpack.c.l.b16 %v788
    %v860 = vunpack.c.l.b16 %v789
    %v861 = vunpack.c.l.b16 %v790
    %v862 = vunpack.c.l.b16 %v791
    %v863 = vunpack.c.l.b16 %v792
    %v864 = vunpack.c.l.b16 %v793
    %v865 = vunpack.c.l.b16 %v794
    %v866 = vunpack.c.l.b16 %v795
    %v867 = vunpack.c.l.b16 %v796
    %v868 = vunpack.c.l.b16 %v797
    %v869 = vunpack.c.l.b16 %v798
    %v870 = vunpack.c.l.b16 %v799
    %v871 = vunpack.c.l.b16 %v800
    %v872 = vunpack.c.l.b16 %v801
    %v873 = vunpack.c.l.b16 %v802
    %v874 = vunpack.c.l.b16 %v803
    %v875 = vunpack.c.l.b16 %v804
    %v876 = vunpack.c.l.b16 %v805
    %v877 = vunpack.c.l.b16 %v806
    %v878 = vunpack.c.l.b16 %v807
    %v879 = vunpack.c.l.b16 %v808
    %v880 = vpack.c.b16 %v849, %v848
    %v881 = vpack.c.b16 %v851, %v850
    %v882 = vpack.c.b16 %v853, %v852
    %v883 = vpack.c.b16 %v855, %v854
    %v884 = vpack.c.b16 %v857, %v856
    %v885 = vpack.c.b16 %v859, %v858
    %v886 = vpack.c.b16 %v861, %v860
    %v887 = vpack.c.b16 %v863, %v862
    %v888 = vpack.c.b16 %v865, %v864
    %v889 = vpack.c.b16 %v867, %v866
    %v890 = vpack.c.b16 %v869, %v868
    %v891 = vpack.c.b16 %v871, %v870
    %v892 = vpack.c.b16 %v873, %v872
    %v893 = vpack.c.b16 %v875, %v874
    %v894 = vpack.c.b16 %v877, %v876
    %v895 = vpack.c.b16 %v879, %v878
    %912 = vmatprep.subr.bf16.mxu0 0
    %913 = vmatpush1.bf16.msra.mxu0 %v880
    %914 = vmatprep.subr.bf16.mxu0 0
    %915 = vmatpush1.bf16.msra.mxu0 %v881
    %916 = vmatprep.subr.bf16.mxu0 0
    %917 = vmatpush1.bf16.msra.mxu0 %v882
    %918 = vmatprep.subr.bf16.mxu0 0
    %919 = vmatpush1.bf16.msra.mxu0 %v883
    %920 = vmatprep.subr.bf16.mxu0 0
    %921 = vmatpush1.bf16.msra.mxu0 %v884
    %922 = vmatprep.subr.bf16.mxu0 0
    %923 = vmatpush1.bf16.msra.mxu0 %v885
    %924 = vmatprep.subr.bf16.mxu0 0
    %925 = vmatpush1.bf16.msra.mxu0 %v886
    %926 = vmatprep.subr.bf16.mxu0 0
    %927 = vmatpush1.bf16.msra.mxu0 %v887
    %928 = vmatprep.subr.bf16.mxu0 0
    %929 = vmatpush1.bf16.msra.mxu0 %v888
    %930 = vmatprep.subr.bf16.mxu0 0
    %931 = vmatpush1.bf16.msra.mxu0 %v889
    %932 = vmatprep.subr.bf16.mxu0 0
    %933 = vmatpush1.bf16.msra.mxu0 %v890
    %934 = vmatprep.subr.bf16.mxu0 0
    %935 = vmatpush1.bf16.msra.mxu0 %v891
    %936 = vmatprep.subr.bf16.mxu0 0
    %937 = vmatpush1.bf16.msra.mxu0 %v892
    %938 = vmatprep.subr.bf16.mxu0 0
    %939 = vmatpush1.bf16.msra.mxu0 %v893
    %940 = vmatprep.subr.bf16.mxu0 0
    %941 = vmatpush1.bf16.msra.mxu0 %v894
    %942 = vmatprep.subr.bf16.mxu0 0
    %943 = vmatpush1.bf16.msra.mxu0 %v895
    %944 = vmatprep.mubr.bf16.mxu0 %v776
    %945 = vmatmul.mubr.bf16.gmra.mrb[0].mxu0 %v775
    %v946 = vpop.f32.mrb[0].mxu0
    %v947 = vadd.f32 %v814, %v946
    %v948 = vpop.f32.mrb[0].mxu0
    %v949 = vpop.f32.mrb[0].mxu0
    %v950 = vadd.f32 %v814, %v949
    %v951 = vpop.f32.mrb[0].mxu0
    %952 = vdwg.mxu0
    %v953 = vlaneseq
    %v954 = vand.u32 %v953, 127
    %vm955 = vcmp.ge.s32.totalorder %v954, 32
    %vm956 = vcmp.gt.f32.partialorder %v947, 20.0
    %vm957 = vcmp.gt.f32.partialorder %v950, 20.0
    %v958 = vmin.f32 %v947, 20.0
    %v959 = vmin.f32 %v950, 20.0
    %v960 = vmul.f32 %v958, 1.442695
    %v961 = vpow.pop %v960
    %v962 = vmul.f32 %v959, 1.442695
    %v963 = vpow.pop %v962
    %v964 = vadd.f32 %v961, 1.0
    %v965 = vlog2.pop %v964
    %v966 = vmul.f32 %v965, 0.6931472
    %v967 = vmul.f32 -0.5, %v961
    %v968 = vadd.f32 %v967, 1.0
    %v969 = vmul.f32 %v968, %v961
    %v970 = vand.u32 2147483647, %v961
    %vm971 = vcmp.lt.f32.partialorder %v970, 0.0004427343
    %v972 = vsel %vm971, %v969, %v966
    %v973 = vadd.f32 %v963, 1.0
    %v974 = vlog2.pop %v973
    %v975 = vmul.f32 %v974, 0.6931472
    %v976 = vmul.f32 -0.5, %v963
    %v977 = vadd.f32 %v976, 1.0
    %v978 = vmul.f32 %v977, %v963
    %v979 = vand.u32 2147483647, %v963
    %vm980 = vcmp.lt.f32.partialorder %v979, 0.0004427343
    %v981 = vsel %vm980, %v978, %v975
    %v982 = vsel %vm956, %v947, %v972
    %v983 = vsel %vm957, %v950, %v981
    %v984 = vadd.f32 %v982, 0.0001
    %v985 = vadd.f32 %v983, 0.0001
    %v986 = vsel %vm955, %v984, %v947
    %v987 = vsel %vm955, %v985, %v950
    %988 = vst.msk [vmem:[#allocation5] sm:$0xff] %vm163, %v986
    %989 = vst.msk [vmem:[#allocation5 + $0x8] sm:$0xff] %vm163, %v987
    // Predicated region
    $region34: #{tpu_custom_call.1} parent=1 // pred_check
      _
    $region35: #{tpu_custom_call.1} parent=1 // pred_check_branch
      %991 = sbr.rel (0) target = $region37
    $region36: #{tpu_custom_call.1} parent=1 // pred_region
      %s993 = ssub.s32 256, 256
      %994 = vsyncadd [#allocation4], %s993
      %s995 = sshll.u32 [#allocation5], 4
      %s996 = int_to_ptr.vmem [resolvable:$true] %s995
      %1001 = dma.vmem_to_hbm [thread:$0]  %s996, 256, %s7, [#allocation4], 128, 128, 8
    $region37: #{tpu_custom_call.1} parent=1 // pred_fallthru
      _
    // Predicated region
    $region38: #{tpu_custom_call.1} parent=1 // pred_check
      _
    $region39: #{tpu_custom_call.1} parent=1 // pred_check_branch
      %1003 = sbr.rel (0) target = $region41
    $region40: #{tpu_custom_call.1} parent=1 // pred_region
      %1004 = dma.done [#allocation4], 256
    $region41: #{tpu_custom_call.1} parent=1 // pred_fallthru
      _
    %1005 = vsyncpa [#allocation3], 1
    %1006 = vsyncpa [#allocation4], 1

</llo_original>
